<compile_context>
chip_gen: v5e
topology: v5e:2x2
jax: 0.10.0
libtpu: 0.0.40
codegen_flags: <defaults>
</compile_context>

<pallas_src>
import jax
import jax.numpy as jnp
from jax.experimental import pallas as pl
from jax.experimental.pallas import tpu as pltpu

IN_DIM = 4
HID_DIM = 4
LANE = 128                  # TPU lane width
PACK = LANE // IN_DIM       # 32 logical rows packed per 128-lane row
MAX_TB_PACKED = 4096        # packed rows per grid step: 2 MiB in + 2 MiB out (f32)


def fused_linear_kernel(x_ref, w_ref, b_ref, o_ref):
    # x_ref: (TB, 128) packed rows, w_ref: (128, 128) block-diagonal folded
    # weight, b_ref: (1, 128) tiled folded bias, o_ref: (TB, 128).
    # One MXU matmul + one VPU bias add; everything lane-dense.
    y = jnp.dot(x_ref[...], w_ref[...], preferred_element_type=jnp.float32)
    o_ref[...] = (y + b_ref[...]).astype(o_ref.dtype)


def _cdiv(a, b):
    return (a + b - 1) // b


def _round_up(n, m):
    return ((n + m - 1) // m) * m


@jax.jit
def mlp_forward(x, w1, b1, w2, b2):
    """Equivalent of MlpModel.forward: linear2(linear1(x)).

    x : (B, IN_DIM)
    w1: (HID_DIM, IN_DIM)  (PyTorch (out, in) layout)   b1: (HID_DIM,)
    w2: (IN_DIM, HID_DIM)                               b2: (IN_DIM,)
    Returns (B, IN_DIM).
    """
    B = x.shape[0]

    # ---- Fold the two bias-linears into one (exact: no activation between) ----
    #   y = (x @ W1^T + b1) @ W2^T + b2 = x @ (W1^T W2^T) + (b1 W2^T + b2)
    w_eff = w1.T @ w2.T                     # (IN_DIM, IN_DIM)
    b_eff = b1 @ w2.T + b2                  # (IN_DIM,)

    # ---- Lift to packed (32 logical rows per 128-lane row) form ---------------
    w_big = jnp.kron(jnp.eye(PACK, dtype=w_eff.dtype), w_eff)   # (128, 128) block-diag
    b_big = jnp.tile(b_eff, PACK).reshape(1, LANE)              # (1, 128)

    # ---- Adaptive batch tiling (minimize padding waste) -----------------------
    n_packed = _cdiv(B, PACK)                         # packed rows actually needed
    n_tiles = _cdiv(n_packed, MAX_TB_PACKED)
    tb = _round_up(_cdiv(n_packed, n_tiles), 8)       # sublane-aligned tile height
    n_packed_pad = tb * n_tiles
    b_pad = n_packed_pad * PACK

    if b_pad != B:
        x_in = jnp.pad(x, ((0, b_pad - B), (0, 0)))   # small batch-axis pad only
    else:
        x_in = x
    x_p = x_in.reshape(n_packed_pad, LANE)            # free contiguous reshape

    out_p = pl.pallas_call(
        fused_linear_kernel,
        out_shape=jax.ShapeDtypeStruct((n_packed_pad, LANE), x.dtype),
        grid=(n_tiles,),
        in_specs=[
            pl.BlockSpec((tb, LANE), lambda i: (i, 0)),      # packed x tile
            pl.BlockSpec((LANE, LANE), lambda i: (0, 0)),    # folded weight (resident)
            pl.BlockSpec((1, LANE), lambda i: (0, 0)),       # folded bias   (resident)
        ],
        out_specs=pl.BlockSpec((tb, LANE), lambda i: (i, 0)),
        compiler_params=pltpu.CompilerParams(
            dimension_semantics=("parallel",),  # shard batch tiles across TCs on v7x
        ),
    )(x_p, w_big, b_big)

    out = out_p.reshape(b_pad, IN_DIM)                # free contiguous reshape
    if b_pad != B:
        out = out[:B]
    return out


if __name__ == "__main__":
    key = jax.random.PRNGKey(0)
    kx, kw1, kb1, kw2, kb2 = jax.random.split(key, 5)

    # Deterministic parameter init mimicking PyTorch's U(-1/sqrt(fan_in), 1/sqrt(fan_in)).
    bound1 = 1.0 / (IN_DIM ** 0.5)
    bound2 = 1.0 / (HID_DIM ** 0.5)
    w1 = jax.random.uniform(kw1, (HID_DIM, IN_DIM), jnp.float32, -bound1, bound1)
    b1 = jax.random.uniform(kb1, (HID_DIM,), jnp.float32, -bound1, bound1)
    w2 = jax.random.uniform(kw2, (IN_DIM, HID_DIM), jnp.float32, -bound2, bound2)
    b2 = jax.random.uniform(kb2, (IN_DIM,), jnp.float32, -bound2, bound2)

    # Small primary shape consistent with the module.
    B = 8
    x = jax.random.normal(kx, (B, IN_DIM), dtype=jnp.float32)

    out = mlp_forward(x, w1, b1, w2, b2)
    jax.block_until_ready(out)

    ref = (x @ w1.T + b1) @ w2.T + b2
    assert out.shape == (B, IN_DIM)
    assert jnp.allclose(out, ref, atol=1e-5, rtol=1e-5)

    # Extra check: batch not a multiple of the 32-row packing factor.
    B2 = 100
    x2 = jax.random.normal(jax.random.PRNGKey(1), (B2, IN_DIM), dtype=jnp.float32)
    out2 = mlp_forward(x2, w1, b1, w2, b2)
    jax.block_until_ready(out2)
    ref2 = (x2 @ w1.T + b1) @ w2.T + b2
    assert out2.shape == (B2, IN_DIM)
    assert jnp.allclose(out2, ref2, atol=1e-5, rtol=1e-5)

    print("KERNEL_OK")
</pallas_src>

<mosaic_0001>
module attributes {stable_mosaic.version = 11 : i64} {
  func.func @fused_linear_kernel(%arg0: i32, %arg1: memref<8x128xf32, #tpu.memory_space<vmem>>, %arg2: memref<128x128xf32, #tpu.memory_space<vmem>>, %arg3: memref<1x128xf32, #tpu.memory_space<vmem>>, %arg4: memref<8x128xf32, #tpu.memory_space<vmem>>) attributes {dimension_semantics = [#tpu.dimension_semantics<parallel>], iteration_bounds = array<i64: 1>, scalar_prefetch = 0 : i64, scratch_operands = 0 : i64, tpu.core_type = #tpu.core_type<tc>, window_params = [{transform_indices = @transform_0, window_bounds = array<i64: 8, 128>}, {pipeline_mode = #tpu.pipeline_mode<synchronous>, transform_indices = @transform_1, window_bounds = array<i64: 128, 128>}, {pipeline_mode = #tpu.pipeline_mode<synchronous>, transform_indices = @transform_2, window_bounds = array<i64: 1, 128>}, {transform_indices = @transform_3, window_bounds = array<i64: 8, 128>}]} {
    %c0 = arith.constant 0 : index
    %c0_0 = arith.constant 0 : index
    %0 = vector.load %arg1[%c0, %c0_0] : memref<8x128xf32, #tpu.memory_space<vmem>>, vector<8x128xf32>
    %c0_1 = arith.constant 0 : index
    %c0_2 = arith.constant 0 : index
    %1 = vector.load %arg2[%c0_1, %c0_2] : memref<128x128xf32, #tpu.memory_space<vmem>>, vector<128x128xf32>
    %cst = arith.constant dense<0.000000e+00> : vector<8x128xf32>
    %2 = tpu.matmul %0, %1, %cst {dimension_numbers = #tpu.dot_dimension_numbers<[1], [0], [0], [1], [0, 0, 1, 1], [], []>} : vector<8x128xf32>, vector<128x128xf32>, vector<8x128xf32> -> vector<8x128xf32>
    %c0_3 = arith.constant 0 : index
    %c0_4 = arith.constant 0 : index
    %3 = vector.load %arg3[%c0_3, %c0_4] : memref<1x128xf32, #tpu.memory_space<vmem>>, vector<1x128xf32>
    %4 = vector.broadcast %3 : vector<1x128xf32> to vector<8x128xf32>
    %5 = arith.addf %2, %4 : vector<8x128xf32>
    %c0_5 = arith.constant 0 : index
    %c0_6 = arith.constant 0 : index
    %6 = vector.load %arg4[%c0_5, %c0_6] : memref<8x128xf32, #tpu.memory_space<vmem>>, vector<8x128xf32>
    tpu.vector_store %arg4[%c0_5, %c0_6], %5 {strides = array<i32>} : memref<8x128xf32, #tpu.memory_space<vmem>>, vector<8x128xf32>,
    return
  }
  func.func @transform_0(%arg0: i32) -> (i32, i32) {
    %c0_i32 = arith.constant 0 : i32
    %c0_i32_0 = arith.constant 0 : i32
    return %arg0, %c0_i32 : i32, i32
  }
  func.func @transform_1(%arg0: i32) -> (i32, i32) {
    %c0_i32 = arith.constant 0 : i32
    %c0_i32_0 = arith.constant 0 : i32
    %c0_i32_1 = arith.constant 0 : i32
    return %c0_i32, %c0_i32_0 : i32, i32
  }
  func.func @transform_2(%arg0: i32) -> (i32, i32) {
    %c0_i32 = arith.constant 0 : i32
    %c0_i32_0 = arith.constant 0 : i32
    %c0_i32_1 = arith.constant 0 : i32
    return %c0_i32, %c0_i32_0 : i32, i32
  }
  func.func @transform_3(%arg0: i32) -> (i32, i32) {
    %c0_i32 = arith.constant 0 : i32
    %c0_i32_0 = arith.constant 0 : i32
    return %arg0, %c0_i32 : i32, i32
  }
}

</mosaic_0001>

<llo_original>
// kernel: tile.8
$region0: #{tile.8}
  #allocation0 [shape = 's32[1]{0}', space=sflag, size = 0x4, scoped, tag = 'scoped memory for tile.8']
  %s0 = inlined_call_operand.vmem [shape: f32[4], index: 0, kind: input, shape index: {}]
  %s1 = inlined_call_operand.vmem [shape: f32[32,4], index: 1, kind: output, shape index: {}]
  // Predicated region
  $region2: #{tile.8} parent=0 // pred_check
    _
  $region3: #{tile.8} parent=0 // pred_check_branch
    %3 = sbr.rel (0) target = $region5
  $region4: #{tile.8} parent=0 // pred_region
    _
  $region5: #{tile.8} parent=0 // pred_fallthru
    _
  %v4 = vld [vmem:[%s0] ss:$0 sm:$0xff]
  %5 = vst [vmem:[%s1] sm:$0xff] %v4
  %s6 = scalar_lea.vmem %s1, 8
  %7 = vst [vmem:[%s6] sm:$0xff] %v4
  %s8 = scalar_lea.vmem %s1, 16
  %9 = vst [vmem:[%s8] sm:$0xff] %v4
  %s10 = scalar_lea.vmem %s1, 24
  %11 = vst [vmem:[%s10] sm:$0xff] %v4

// kernel: tile.9
$region0: #{tile.9}
  %s0 = inlined_call_operand.vmem [shape: f32[32,4], index: 0, kind: input, shape index: {}]
  %s1 = inlined_call_operand.vmem [shape: f32[1,128], index: 1, kind: output, shape index: {}]
  $region1: #{tile.9} parent=0
    #allocation0 [shape = 'u8[4096]{0}', space=vmem, size = 0x1000, scoped, tag = 'scoped mem for output reshape']
    %v2 = vld [vmem:[%s0] sm:$0x1]
    %vm3 = vcmask 31744
    %4 = vst.msk [vmem:[#allocation0] sm:$0x1] %vm3, %v2
    %s5 = scalar_lea.vmem %s0, 31
    %v6 = vld [vmem:[%s5] sm:$0x1]
    %7 = vrot.lane.b32.xlu0 %v6, 124
    %v8 = vpop.permute.xlu0 %7
    %vm9 = vcmask 1048544
    %10 = vst.msk [vmem:[#allocation0] sm:$0x1] %vm9, %v8
    %s11 = scalar_lea.vmem %s0, 30
    %v12 = vld [vmem:[%s11] sm:$0x1]
    %13 = vrot.lane.b32.xlu0 %v12, 120
    %v14 = vpop.permute.xlu0 %13
    %vm15 = vcmask 1015744
    %16 = vst.msk [vmem:[#allocation0] sm:$0x1] %vm15, %v14
    %s17 = scalar_lea.vmem %s0, 29
    %v18 = vld [vmem:[%s17] sm:$0x1]
    %19 = vrot.lane.b32.xlu0 %v18, 116
    %v20 = vpop.permute.xlu0 %19
    %vm21 = vcmask 982944
    %22 = vst.msk [vmem:[#allocation0] sm:$0x1] %vm21, %v20
    %s23 = scalar_lea.vmem %s0, 28
    %v24 = vld [vmem:[%s23] sm:$0x1]
    %25 = vrot.lane.b32.xlu0 %v24, 112
    %v26 = vpop.permute.xlu0 %25
    %vm27 = vcmask 950144
    %28 = vst.msk [vmem:[#allocation0] sm:$0x1] %vm27, %v26
    %s29 = scalar_lea.vmem %s0, 27
    %v30 = vld [vmem:[%s29] sm:$0x1]
    %31 = vrot.lane.b32.xlu0 %v30, 108
    %v32 = vpop.permute.xlu0 %31
    %vm33 = vcmask 917344
    %34 = vst.msk [vmem:[#allocation0] sm:$0x1] %vm33, %v32
    %s35 = scalar_lea.vmem %s0, 26
    %v36 = vld [vmem:[%s35] sm:$0x1]
    %37 = vrot.lane.b32.xlu0 %v36, 104
    %v38 = vpop.permute.xlu0 %37
    %vm39 = vcmask 884544
    %40 = vst.msk [vmem:[#allocation0] sm:$0x1] %vm39, %v38
    %s41 = scalar_lea.vmem %s0, 25
    %v42 = vld [vmem:[%s41] sm:$0x1]
    %43 = vrot.lane.b32.xlu0 %v42, 100
    %v44 = vpop.permute.xlu0 %43
    %vm45 = vcmask 851744
    %46 = vst.msk [vmem:[#allocation0] sm:$0x1] %vm45, %v44
    %s47 = scalar_lea.vmem %s0, 24
    %v48 = vld [vmem:[%s47] sm:$0x1]
    %49 = vrot.lane.b32.xlu0 %v48, 96
    %v50 = vpop.permute.xlu0 %49
    %vm51 = vcmask 818944
    %52 = vst.msk [vmem:[#allocation0] sm:$0x1] %vm51, %v50
    %s53 = scalar_lea.vmem %s0, 23
    %v54 = vld [vmem:[%s53] sm:$0x1]
    %55 = vrot.lane.b32.xlu0 %v54, 92
    %v56 = vpop.permute.xlu0 %55
    %vm57 = vcmask 786144
    %58 = vst.msk [vmem:[#allocation0] sm:$0x1] %vm57, %v56
    %s59 = scalar_lea.vmem %s0, 22
    %v60 = vld [vmem:[%s59] sm:$0x1]
    %61 = vrot.lane.b32.xlu0 %v60, 88
    %v62 = vpop.permute.xlu0 %61
    %vm63 = vcmask 753344
    %64 = vst.msk [vmem:[#allocation0] sm:$0x1] %vm63, %v62
    %s65 = scalar_lea.vmem %s0, 21
    %v66 = vld [vmem:[%s65] sm:$0x1]
    %67 = vrot.lane.b32.xlu0 %v66, 84
    %v68 = vpop.permute.xlu0 %67
    %vm69 = vcmask 720544
    %70 = vst.msk [vmem:[#allocation0] sm:$0x1] %vm69, %v68
    %s71 = scalar_lea.vmem %s0, 20
    %v72 = vld [vmem:[%s71] sm:$0x1]
    %73 = vrot.lane.b32.xlu0 %v72, 80
    %v74 = vpop.permute.xlu0 %73
    %vm75 = vcmask 687744
    %76 = vst.msk [vmem:[#allocation0] sm:$0x1] %vm75, %v74
    %s77 = scalar_lea.vmem %s0, 19
    %v78 = vld [vmem:[%s77] sm:$0x1]
    %79 = vrot.lane.b32.xlu0 %v78, 76
    %v80 = vpop.permute.xlu0 %79
    %vm81 = vcmask 654944
    %82 = vst.msk [vmem:[#allocation0] sm:$0x1] %vm81, %v80
    %s83 = scalar_lea.vmem %s0, 18
    %v84 = vld [vmem:[%s83] sm:$0x1]
    %85 = vrot.lane.b32.xlu0 %v84, 72
    %v86 = vpop.permute.xlu0 %85
    %vm87 = vcmask 622144
    %88 = vst.msk [vmem:[#allocation0] sm:$0x1] %vm87, %v86
    %s89 = scalar_lea.vmem %s0, 17
    %v90 = vld [vmem:[%s89] sm:$0x1]
    %91 = vrot.lane.b32.xlu0 %v90, 68
    %v92 = vpop.permute.xlu0 %91
    %vm93 = vcmask 589344
    %94 = vst.msk [vmem:[#allocation0] sm:$0x1] %vm93, %v92
    %s95 = scalar_lea.vmem %s0, 16
    %v96 = vld [vmem:[%s95] sm:$0x1]
    %97 = vrot.lane.b32.xlu0 %v96, 64
    %v98 = vpop.permute.xlu0 %97
    %vm99 = vcmask 556544
    %100 = vst.msk [vmem:[#allocation0] sm:$0x1] %vm99, %v98
    %s101 = scalar_lea.vmem %s0, 15
    %v102 = vld [vmem:[%s101] sm:$0x1]
    %103 = vrot.lane.b32.xlu0 %v102, 60
    %v104 = vpop.permute.xlu0 %103
    %vm105 = vcmask 523744
    %106 = vst.msk [vmem:[#allocation0] sm:$0x1] %vm105, %v104
    %s107 = scalar_lea.vmem %s0, 14
    %v108 = vld [vmem:[%s107] sm:$0x1]
    %109 = vrot.lane.b32.xlu0 %v108, 56
    %v110 = vpop.permute.xlu0 %109
    %vm111 = vcmask 490944
    %112 = vst.msk [vmem:[#allocation0] sm:$0x1] %vm111, %v110
    %s113 = scalar_lea.vmem %s0, 13
    %v114 = vld [vmem:[%s113] sm:$0x1]
    %115 = vrot.lane.b32.xlu0 %v114, 52
    %v116 = vpop.permute.xlu0 %115
    %vm117 = vcmask 458144
    %118 = vst.msk [vmem:[#allocation0] sm:$0x1] %vm117, %v116
    %s119 = scalar_lea.vmem %s0, 12
    %v120 = vld [vmem:[%s119] sm:$0x1]
    %121 = vrot.lane.b32.xlu0 %v120, 48
    %v122 = vpop.permute.xlu0 %121
    %vm123 = vcmask 425344
    %124 = vst.msk [vmem:[#allocation0] sm:$0x1] %vm123, %v122
    %s125 = scalar_lea.vmem %s0, 11
    %v126 = vld [vmem:[%s125] sm:$0x1]
    %127 = vrot.lane.b32.xlu0 %v126, 44
    %v128 = vpop.permute.xlu0 %127
    %vm129 = vcmask 392544
    %130 = vst.msk [vmem:[#allocation0] sm:$0x1] %vm129, %v128
    %s131 = scalar_lea.vmem %s0, 10
    %v132 = vld [vmem:[%s131] sm:$0x1]
    %133 = vrot.lane.b32.xlu0 %v132, 40
    %v134 = vpop.permute.xlu0 %133
    %vm135 = vcmask 359744
    %136 = vst.msk [vmem:[#allocation0] sm:$0x1] %vm135, %v134
    %s137 = scalar_lea.vmem %s0, 9
    %v138 = vld [vmem:[%s137] sm:$0x1]
    %139 = vrot.lane.b32.xlu0 %v138, 36
    %v140 = vpop.permute.xlu0 %139
    %vm141 = vcmask 326944
    %142 = vst.msk [vmem:[#allocation0] sm:$0x1] %vm141, %v140
    %s143 = scalar_lea.vmem %s0, 8
    %v144 = vld [vmem:[%s143] sm:$0x1]
    %145 = vrot.lane.b32.xlu0 %v144, 32
    %v146 = vpop.permute.xlu0 %145
    %vm147 = vcmask 294144
    %148 = vst.msk [vmem:[#allocation0] sm:$0x1] %vm147, %v146
    %s149 = scalar_lea.vmem %s0, 7
    %v150 = vld [vmem:[%s149] sm:$0x1]
    %151 = vrot.lane.b32.xlu0 %v150, 28
    %v152 = vpop.permute.xlu0 %151
    %vm153 = vcmask 261344
    %154 = vst.msk [vmem:[#allocation0] sm:$0x1] %vm153, %v152
    %s155 = scalar_lea.vmem %s0, 6
    %v156 = vld [vmem:[%s155] sm:$0x1]
    %157 = vrot.lane.b32.xlu0 %v156, 24
    %v158 = vpop.permute.xlu0 %157
    %vm159 = vcmask 228544
    %160 = vst.msk [vmem:[#allocation0] sm:$0x1] %vm159, %v158
    %s161 = scalar_lea.vmem %s0, 5
    %v162 = vld [vmem:[%s161] sm:$0x1]
    %163 = vrot.lane.b32.xlu0 %v162, 20
    %v164 = vpop.permute.xlu0 %163
    %vm165 = vcmask 195744
    %166 = vst.msk [vmem:[#allocation0] sm:$0x1] %vm165, %v164
    %s167 = scalar_lea.vmem %s0, 4
    %v168 = vld [vmem:[%s167] sm:$0x1]
    %169 = vrot.lane.b32.xlu0 %v168, 16
    %v170 = vpop.permute.xlu0 %169
    %vm171 = vcmask 162944
    %172 = vst.msk [vmem:[#allocation0] sm:$0x1] %vm171, %v170
    %s173 = scalar_lea.vmem %s0, 3
    %v174 = vld [vmem:[%s173] sm:$0x1]
    %175 = vrot.lane.b32.xlu0 %v174, 12
    %v176 = vpop.permute.xlu0 %175
    %vm177 = vcmask 130144
    %178 = vst.msk [vmem:[#allocation0] sm:$0x1] %vm177, %v176
    %s179 = scalar_lea.vmem %s0, 2
    %v180 = vld [vmem:[%s179] sm:$0x1]
    %181 = vrot.lane.b32.xlu0 %v180, 8
    %v182 = vpop.permute.xlu0 %181
    %vm183 = vcmask 97344
    %184 = vst.msk [vmem:[#allocation0] sm:$0x1] %vm183, %v182
    %s185 = scalar_lea.vmem %s0, 1
    %v186 = vld [vmem:[%s185] sm:$0x1]
    %187 = vrot.lane.b32.xlu0 %v186, 4
    %v188 = vpop.permute.xlu0 %187
    %vm189 = vcmask 64544
    %190 = vst.msk [vmem:[#allocation0] sm:$0x1] %vm189, %v188
    %s192 = ssub.s32 2, 1
    %v193 = vld [vmem:[#allocation0] sm:%s192]
    %s195 = ssub.s32 2, 1
    %196 = vst [vmem:[%s1] sm:%s195] %v193

// kernel: mlp_forward.1
$region0: #{mlp_forward.1}
  #allocation0 [shape = 'u32[]', space=smem, size = 0x4, offset = 0x4, fixed_abs, tag = 'smem constant byte address 0x4 - core index']
  #allocation1 [shape = 'u32[72,128]{1,0:T(1,128)}', space=vmem, size = 0x9000, scoped, tag = 'internal scratch']
  %s0 = inlined_call_operand.vmem [shape: f32[8,128], index: 0, kind: input, shape index: {}]
  %s1 = inlined_call_operand.vmem [shape: f32[128,128], index: 1, kind: input, shape index: {}]
  %s2 = inlined_call_operand.vmem [shape: f32[1,128], index: 2, kind: input, shape index: {}]
  %s3 = inlined_call_operand.vmem [shape: f32[8,128], index: 3, kind: output, shape index: {}]
  %s4 = sld [smem:[#allocation0]]
  $region22: #{mlp_forward.1} parent=0
    _
  %s6 = ssub.s32 1, %s4
  %s7 = scalar_select 0, %s6, %s4
  // Predicated region
  $region2: #{mlp_forward.1} parent=0 // pred_check
    _
  $region3: #{mlp_forward.1} parent=0 // pred_check_branch
    %9 = sbr.rel (0) target = $region5
  $region4: #{mlp_forward.1} parent=0 // pred_region
    _
  $region5: #{mlp_forward.1} parent=0 // pred_fallthru
    _
  // Predicated region
  $region6: #{mlp_forward.1} parent=0 // pred_check
    _
  $region7: #{mlp_forward.1} parent=0 // pred_check_branch
    %11 = sbr.rel (0) target = $region9
  $region8: #{mlp_forward.1} parent=0 // pred_region
    _
  $region9: #{mlp_forward.1} parent=0 // pred_fallthru
    _
  // Predicated region
  $region10: #{mlp_forward.1} parent=0 // pred_check
    _
  $region11: #{mlp_forward.1} parent=0 // pred_check_branch
    %13 = sbr.rel (0) target = $region13
  $region12: #{mlp_forward.1} parent=0 // pred_region
    _
  $region13: #{mlp_forward.1} parent=0 // pred_fallthru
    _
  %v14 = vld [vmem:[%s0] sm:$0xff]
  %v15 = vld [vmem:[%s1] sm:$0xff]
  %v16 = vld [vmem:[%s1 + $0x8] sm:$0xff]
  %v17 = vld [vmem:[%s1 + $0x10] sm:$0xff]
  %v18 = vld [vmem:[%s1 + $0x18] sm:$0xff]
  %v19 = vld [vmem:[%s1 + $0x20] sm:$0xff]
  %v20 = vld [vmem:[%s1 + $0x28] sm:$0xff]
  %v21 = vld [vmem:[%s1 + $0x30] sm:$0xff]
  %v22 = vld [vmem:[%s1 + $0x38] sm:$0xff]
  %v23 = vld [vmem:[%s1 + $0x40] sm:$0xff]
  %v24 = vld [vmem:[%s1 + $0x48] sm:$0xff]
  %v25 = vld [vmem:[%s1 + $0x50] sm:$0xff]
  %v26 = vld [vmem:[%s1 + $0x58] sm:$0xff]
  %v27 = vld [vmem:[%s1 + $0x60] sm:$0xff]
  %v28 = vld [vmem:[%s1 + $0x68] sm:$0xff]
  %v29 = vld [vmem:[%s1 + $0x70] sm:$0xff]
  %v30 = vld [vmem:[%s1 + $0x78] sm:$0xff]
  %v31 = vld [vmem:[%s2] sm:$0x1]
  %v33 = vperm.slane %v31, 0
  %35 = vmatpush.msra.mxu0 %v30
  %36 = vmatpush.msra.mxu0 %v29
  %37 = vmatpush.msra.mxu0 %v28
  %38 = vmatpush.msra.mxu0 %v27
  %39 = vmatpush.msra.mxu0 %v26
  %40 = vmatpush.msra.mxu0 %v25
  %41 = vmatpush.msra.mxu0 %v24
  %42 = vmatpush.msra.mxu0 %v23
  %43 = vmatpush.msra.mxu0 %v22
  %44 = vmatpush.msra.mxu0 %v21
  %45 = vmatpush.msra.mxu0 %v20
  %46 = vmatpush.msra.mxu0 %v19
  %47 = vmatpush.msra.mxu0 %v18
  %48 = vmatpush.msra.mxu0 %v17
  %49 = vmatpush.msra.mxu0 %v16
  %50 = vmatpush.msra.mxu0 %v15
  %51 = vmatmul.f32.gmra.mxu0 %v14
  %v52 = vpop.f32.mrf.mxu0
  %v53 = vadd.f32 %v33, %v52
  %54 = vdwg.mxu0
  %55 = vst [vmem:[%s3] sm:$0xff] %v53
  // Predicated region
  $region14: #{mlp_forward.1} parent=0 // pred_check
    _
  $region15: #{mlp_forward.1} parent=0 // pred_check_branch
    %57 = sbr.rel (0) target = $region17
  $region16: #{mlp_forward.1} parent=0 // pred_region
    _
  $region17: #{mlp_forward.1} parent=0 // pred_fallthru
    _
  // Predicated region
  $region18: #{mlp_forward.1} parent=0 // pred_check
    _
  $region19: #{mlp_forward.1} parent=0 // pred_check_branch
    %59 = sbr.rel (0) target = $region21
  $region20: #{mlp_forward.1} parent=0 // pred_region
    _
  $region21: #{mlp_forward.1} parent=0 // pred_fallthru
    _

</llo_original>
